<compile_context>
chip_gen: v7x
topology: tpu7x:2x2x1
jax: 0.10.0
libtpu: 0.0.40
codegen_flags: <defaults>
</compile_context>

<pallas_src>
import jax
import jax.numpy as jnp
from jax.experimental import pallas as pl
from jax.experimental.pallas import tpu as pltpu


def _round_up(n, m):
    return ((n + m - 1) // m) * m


def _sampler_prob_kernel(x_ref, w1_ref, b1_ref, wh_ref, bh_ref, eps_ref, out_ref):
    """Probabilistic branch: out[:, :F] = mu + exp(logvar)*eps, out[:, F:] = kld."""
    F = out_ref.shape[1] // 2

    # encode = relu(x @ W1 + b1)
    enc = jnp.dot(x_ref[...], w1_ref[...], preferred_element_type=jnp.float32)
    enc = jnp.maximum(enc + b1_ref[...].astype(jnp.float32), 0.0)

    # Fused heads: one (H, 2F) matmul; columns [:F] = mu, [F:] = logvar.
    y = jnp.dot(enc.astype(wh_ref.dtype), wh_ref[...],
                preferred_element_type=jnp.float32)
    y = y + bh_ref[...].astype(jnp.float32)
    mu = y[:, :F]
    logvar = y[:, F:]

    ev = jnp.exp(logvar)                      # single EUP exp; exp(2*lv) == ev*ev
    ret = mu + ev * eps_ref[...].astype(jnp.float32)
    kld = 0.5 * (1.0 + logvar - mu * mu - ev * ev)

    # Two sliced stores instead of a lane-axis concatenate.
    out_ref[:, :F] = ret.astype(out_ref.dtype)
    out_ref[:, F:] = kld.astype(out_ref.dtype)


def _sampler_det_kernel(x_ref, w1_ref, b1_ref, wmu_ref, bmu_ref, out_ref):
    """Deterministic branch: out = mu."""
    enc = jnp.dot(x_ref[...], w1_ref[...], preferred_element_type=jnp.float32)
    enc = jnp.maximum(enc + b1_ref[...].astype(jnp.float32), 0.0)
    mu = jnp.dot(enc.astype(wmu_ref.dtype), wmu_ref[...],
                 preferred_element_type=jnp.float32)
    out_ref[...] = (mu + bmu_ref[...].astype(jnp.float32)).astype(out_ref.dtype)


def init_sampler_params(key, feature_size, hidden_size, dtype=jnp.float32):
    """Parameter init (nn.Linear shapes, stored transposed, heads fused (H, 2F))."""
    k1, k2, k3, k4, k5, k6 = jax.random.split(key, 6)
    s1 = 1.0 / float(feature_size) ** 0.5
    s2 = 1.0 / float(hidden_size) ** 0.5
    wmu = jax.random.uniform(k3, (hidden_size, feature_size), dtype, -s2, s2)
    bmu = jax.random.uniform(k4, (1, feature_size), dtype, -s2, s2)
    wvar = jax.random.uniform(k5, (hidden_size, feature_size), dtype, -s2, s2)
    bvar = jax.random.uniform(k6, (1, feature_size), dtype, -s2, s2)
    return {
        # mlp1: F -> H
        "w1": jax.random.uniform(k1, (feature_size, hidden_size), dtype, -s1, s1),
        "b1": jax.random.uniform(k2, (1, hidden_size), dtype, -s1, s1),
        # Fused mlp2mu / mlp2var heads: H -> 2F (one MXU matmul in-kernel).
        "w_heads": jnp.concatenate([wmu, wvar], axis=1),
        "b_heads": jnp.concatenate([bmu, bvar], axis=1),
    }


def sampler_forward(x, params, eps=None, probabilistic=True, block_b=256):
    B, F = x.shape
    H = params["w1"].shape[1]
    w1, b1 = params["w1"], params["b1"]
    wh, bh = params["w_heads"], params["b_heads"]

    # Batch tile: multiple of 8 sublanes, capped at block_b.  Grid over batch so
    # large B streams/pipelines x/eps/out while the small weights stay pinned.
    tb = min(block_b, _round_up(B, 8))
    Bp = _round_up(B, tb)
    if Bp != B:
        pad = ((0, Bp - B), (0, 0))
        x = jnp.pad(x, pad)
        if eps is not None:
            eps = jnp.pad(eps, pad)
    grid = (Bp // tb,)

    def pinned(shape):
        return pl.BlockSpec(shape, lambda i: (0, 0))

    def rows(cols):
        return pl.BlockSpec((tb, cols), lambda i: (i, 0))

    def nbytes(a):
        return int(a.size) * a.dtype.itemsize

    cparams = pltpu.CompilerParams(dimension_semantics=("parallel",))

    if probabilistic:
        assert eps is not None, "probabilistic=True requires eps of shape (B, F)"
        out_bytes = Bp * 2 * F * x.dtype.itemsize
        cost = pl.CostEstimate(
            flops=2 * Bp * (F * H + H * 2 * F),
            transcendentals=Bp * F,
            bytes_accessed=nbytes(x) + nbytes(eps) + nbytes(w1) + nbytes(b1)
            + nbytes(wh) + nbytes(bh) + out_bytes,
        )
        out = pl.pallas_call(
            _sampler_prob_kernel,
            out_shape=jax.ShapeDtypeStruct((Bp, 2 * F), x.dtype),
            grid=grid,
            in_specs=[rows(F), pinned((F, H)), pinned((1, H)),
                      pinned((H, 2 * F)), pinned((1, 2 * F)), rows(F)],
            out_specs=rows(2 * F),
            compiler_params=cparams,
            cost_estimate=cost,
        )(x, w1, b1, wh, bh, eps)
        return out[:B]
    else:
        # Deterministic branch only needs the mu head; slice the fused weights
        # in the wrapper (XLA) so the kernel does a single small matmul chain.
        wmu = wh[:, :F]
        bmu = bh[:, :F]
        out_bytes = Bp * F * x.dtype.itemsize
        cost = pl.CostEstimate(
            flops=2 * Bp * (F * H + H * F),
            transcendentals=0,
            bytes_accessed=nbytes(x) + nbytes(w1) + nbytes(b1)
            + nbytes(wmu) + nbytes(bmu) + out_bytes,
        )
        out = pl.pallas_call(
            _sampler_det_kernel,
            out_shape=jax.ShapeDtypeStruct((Bp, F), x.dtype),
            grid=grid,
            in_specs=[rows(F), pinned((F, H)), pinned((1, H)),
                      pinned((H, F)), pinned((1, F))],
            out_specs=rows(F),
            compiler_params=cparams,
            cost_estimate=cost,
        )(x, w1, b1, wmu, bmu)
        return out[:B]


def _reference_forward(x, params, eps, probabilistic=True):
    """Pure-JAX reference (same math as the PyTorch module)."""
    F = x.shape[1]
    enc = jax.nn.relu(x @ params["w1"] + params["b1"])
    y = enc @ params["w_heads"] + params["b_heads"]
    mu, logvar = y[:, :F], y[:, F:]
    if not probabilistic:
        return mu
    ret = mu + jnp.exp(logvar) * eps
    kld = 0.5 * (1.0 + logvar - mu ** 2 - jnp.exp(2.0 * logvar))
    return jnp.concatenate([ret, kld], axis=1)


if __name__ == "__main__":
    # Small shapes consistent with the module's B x F input.
    B, F, H = 8, 32, 64

    key = jax.random.PRNGKey(0)
    k_params, k_x, k_eps = jax.random.split(key, 3)

    params = init_sampler_params(k_params, feature_size=F, hidden_size=H)
    x = jax.random.normal(k_x, (B, F), dtype=jnp.float32)
    eps = jax.random.normal(k_eps, (B, F), dtype=jnp.float32)

    # Probabilistic path (B x 2F output).
    out = jax.block_until_ready(sampler_forward(x, params, eps=eps, probabilistic=True))
    ref = _reference_forward(x, params, eps, probabilistic=True)
    assert out.shape == (B, 2 * F)
    assert jnp.allclose(out, ref, atol=1e-5, rtol=1e-5)

    # Deterministic path (B x F output).
    out_det = jax.block_until_ready(sampler_forward(x, params, probabilistic=False))
    ref_det = _reference_forward(x, params, eps, probabilistic=False)
    assert out_det.shape == (B, F)
    assert jnp.allclose(out_det, ref_det, atol=1e-5, rtol=1e-5)

    # Ragged batch + multi-step grid path (exercises batch tiling / padding).
    B2 = 20
    x2 = jax.random.normal(jax.random.PRNGKey(1), (B2, F), dtype=jnp.float32)
    eps2 = jax.random.normal(jax.random.PRNGKey(2), (B2, F), dtype=jnp.float32)
    out2 = jax.block_until_ready(
        sampler_forward(x2, params, eps=eps2, probabilistic=True, block_b=8))
    ref2 = _reference_forward(x2, params, eps2, probabilistic=True)
    assert out2.shape == (B2, 2 * F)
    assert jnp.allclose(out2, ref2, atol=1e-5, rtol=1e-5)

    print("KERNEL_OK")
</pallas_src>

<mosaic_0001>
module attributes {stable_mosaic.version = 11 : i64} {
  func.func @_sampler_prob_kernel(%arg0: i32, %arg1: memref<8x32xf32, #tpu.memory_space<vmem>>, %arg2: memref<32x64xf32, #tpu.memory_space<vmem>>, %arg3: memref<1x64xf32, #tpu.memory_space<vmem>>, %arg4: memref<64x64xf32, #tpu.memory_space<vmem>>, %arg5: memref<1x64xf32, #tpu.memory_space<vmem>>, %arg6: memref<8x32xf32, #tpu.memory_space<vmem>>, %arg7: memref<8x64xf32, #tpu.memory_space<vmem>>) attributes {dimension_semantics = [#tpu.dimension_semantics<parallel>], iteration_bounds = array<i64: 1>, scalar_prefetch = 0 : i64, scratch_operands = 0 : i64, tpu.core_type = #tpu.core_type<tc>, window_params = [{transform_indices = @transform_0, window_bounds = array<i64: 8, 32>}, {pipeline_mode = #tpu.pipeline_mode<synchronous>, transform_indices = @transform_1, window_bounds = array<i64: 32, 64>}, {pipeline_mode = #tpu.pipeline_mode<synchronous>, transform_indices = @transform_2, window_bounds = array<i64: 1, 64>}, {pipeline_mode = #tpu.pipeline_mode<synchronous>, transform_indices = @transform_3, window_bounds = array<i64: 64, 64>}, {pipeline_mode = #tpu.pipeline_mode<synchronous>, transform_indices = @transform_4, window_bounds = array<i64: 1, 64>}, {transform_indices = @transform_5, window_bounds = array<i64: 8, 32>}, {transform_indices = @transform_6, window_bounds = array<i64: 8, 64>}]} {
    %c0 = arith.constant 0 : index
    %c0_0 = arith.constant 0 : index
    %0 = vector.load %arg1[%c0, %c0_0] : memref<8x32xf32, #tpu.memory_space<vmem>>, vector<8x32xf32>
    %c0_1 = arith.constant 0 : index
    %c0_2 = arith.constant 0 : index
    %1 = vector.load %arg2[%c0_1, %c0_2] : memref<32x64xf32, #tpu.memory_space<vmem>>, vector<32x64xf32>
    %cst = arith.constant dense<0.000000e+00> : vector<8x64xf32>
    %2 = tpu.matmul %0, %1, %cst {dimension_numbers = #tpu.dot_dimension_numbers<[1], [0], [0], [1], [0, 0, 1, 1], [], []>} : vector<8x32xf32>, vector<32x64xf32>, vector<8x64xf32> -> vector<8x64xf32>
    %c0_3 = arith.constant 0 : index
    %c0_4 = arith.constant 0 : index
    %3 = vector.load %arg3[%c0_3, %c0_4] : memref<1x64xf32, #tpu.memory_space<vmem>>, vector<1x64xf32>
    %4 = vector.broadcast %3 : vector<1x64xf32> to vector<8x64xf32>
    %5 = arith.addf %2, %4 : vector<8x64xf32>
    %cst_5 = arith.constant 0.000000e+00 : f32
    %6 = vector.broadcast %cst_5 : f32 to vector<8x64xf32>
    %7 = arith.maximumf %5, %6 : vector<8x64xf32>
    %c0_6 = arith.constant 0 : index
    %c0_7 = arith.constant 0 : index
    %8 = vector.load %arg4[%c0_6, %c0_7] : memref<64x64xf32, #tpu.memory_space<vmem>>, vector<64x64xf32>
    %cst_8 = arith.constant dense<0.000000e+00> : vector<8x64xf32>
    %9 = tpu.matmul %7, %8, %cst_8 {dimension_numbers = #tpu.dot_dimension_numbers<[1], [0], [0], [1], [0, 0, 1, 1], [], []>} : vector<8x64xf32>, vector<64x64xf32>, vector<8x64xf32> -> vector<8x64xf32>
    %c0_9 = arith.constant 0 : index
    %c0_10 = arith.constant 0 : index
    %10 = vector.load %arg5[%c0_9, %c0_10] : memref<1x64xf32, #tpu.memory_space<vmem>>, vector<1x64xf32>
    %11 = vector.broadcast %10 : vector<1x64xf32> to vector<8x64xf32>
    %12 = arith.addf %9, %11 : vector<8x64xf32>
    %13 = vector.extract_strided_slice %12 {offsets = [0, 0], sizes = [8, 32], strides = [1, 1]} : vector<8x64xf32> to vector<8x32xf32>
    %14 = vector.extract_strided_slice %12 {offsets = [0, 32], sizes = [8, 32], strides = [1, 1]} : vector<8x64xf32> to vector<8x32xf32>
    %15 = math.exp %14 : vector<8x32xf32>
    %c0_11 = arith.constant 0 : index
    %c0_12 = arith.constant 0 : index
    %16 = vector.load %arg6[%c0_11, %c0_12] : memref<8x32xf32, #tpu.memory_space<vmem>>, vector<8x32xf32>
    %17 = arith.mulf %15, %16 : vector<8x32xf32>
    %18 = arith.addf %13, %17 : vector<8x32xf32>
    %cst_13 = arith.constant 1.000000e+00 : f32
    %19 = vector.broadcast %cst_13 : f32 to vector<8x32xf32>
    %20 = arith.addf %19, %14 : vector<8x32xf32>
    %21 = arith.mulf %13, %13 : vector<8x32xf32>
    %22 = arith.subf %20, %21 : vector<8x32xf32>
    %23 = arith.mulf %15, %15 : vector<8x32xf32>
    %24 = arith.subf %22, %23 : vector<8x32xf32>
    %cst_14 = arith.constant 5.000000e-01 : f32
    %25 = vector.broadcast %cst_14 : f32 to vector<8x32xf32>
    %26 = arith.mulf %25, %24 : vector<8x32xf32>
    %c0_15 = arith.constant 0 : index
    %c0_16 = arith.constant 0 : index
    %27 = vector.load %arg7[%c0_15, %c0_16] : memref<8x64xf32, #tpu.memory_space<vmem>>, vector<8x32xf32>
    tpu.vector_store %arg7[%c0_15, %c0_16], %18 {strides = array<i32>} : memref<8x64xf32, #tpu.memory_space<vmem>>, vector<8x32xf32>,
    %c0_17 = arith.constant 0 : index
    %c32 = arith.constant 32 : index
    %28 = vector.load %arg7[%c0_17, %c32] : memref<8x64xf32, #tpu.memory_space<vmem>>, vector<8x32xf32>
    tpu.vector_store %arg7[%c0_17, %c32], %26 {strides = array<i32>} : memref<8x64xf32, #tpu.memory_space<vmem>>, vector<8x32xf32>,
    return
  }
  func.func @transform_0(%arg0: i32) -> (i32, i32) {
    %c0_i32 = arith.constant 0 : i32
    %c0_i32_0 = arith.constant 0 : i32
    return %arg0, %c0_i32 : i32, i32
  }
  func.func @transform_1(%arg0: i32) -> (i32, i32) {
    %c0_i32 = arith.constant 0 : i32
    %c0_i32_0 = arith.constant 0 : i32
    %c0_i32_1 = arith.constant 0 : i32
    return %c0_i32, %c0_i32_0 : i32, i32
  }
  func.func @transform_2(%arg0: i32) -> (i32, i32) {
    %c0_i32 = arith.constant 0 : i32
    %c0_i32_0 = arith.constant 0 : i32
    %c0_i32_1 = arith.constant 0 : i32
    return %c0_i32, %c0_i32_0 : i32, i32
  }
  func.func @transform_3(%arg0: i32) -> (i32, i32) {
    %c0_i32 = arith.constant 0 : i32
    %c0_i32_0 = arith.constant 0 : i32
    %c0_i32_1 = arith.constant 0 : i32
    return %c0_i32, %c0_i32_0 : i32, i32
  }
  func.func @transform_4(%arg0: i32) -> (i32, i32) {
    %c0_i32 = arith.constant 0 : i32
    %c0_i32_0 = arith.constant 0 : i32
    %c0_i32_1 = arith.constant 0 : i32
    return %c0_i32, %c0_i32_0 : i32, i32
  }
  func.func @transform_5(%arg0: i32) -> (i32, i32) {
    %c0_i32 = arith.constant 0 : i32
    %c0_i32_0 = arith.constant 0 : i32
    return %arg0, %c0_i32 : i32, i32
  }
  func.func @transform_6(%arg0: i32) -> (i32, i32) {
    %c0_i32 = arith.constant 0 : i32
    %c0_i32_0 = arith.constant 0 : i32
    return %arg0, %c0_i32 : i32, i32
  }
}

</mosaic_0001>

<llo_original>
// kernel: tpu_custom_call.1
$region0: #{tpu_custom_call.1}
  #allocation0 [shape = 'u32[]', space=smem, size = 0x4, offset = 0x4, fixed_abs, tag = 'smem constant byte address 0x4 - core index']
  #allocation1 [shape = 'u32[144,128]{1,0:T(1,128)}', space=vmem, size = 0x12000, scoped, tag = 'internal scratch']
  %s0 = inlined_call_operand.hbm [shape: f32[8,32], index: 0, kind: input, shape index: {}]
  %s1 = inlined_call_operand.hbm [shape: f32[32,64], index: 1, kind: input, shape index: {}]
  %s2 = inlined_call_operand.vmem [shape: f32[1,64], index: 2, kind: input, shape index: {}]
  %s3 = inlined_call_operand.hbm [shape: f32[64,64], index: 3, kind: input, shape index: {}]
  %s4 = inlined_call_operand.vmem [shape: f32[1,64], index: 4, kind: input, shape index: {}]
  %s5 = inlined_call_operand.vmem [shape: f32[8,32], index: 5, kind: input, shape index: {}]
  %s6 = inlined_call_operand.hbm [shape: f32[8,64], index: 6, kind: output, shape index: {}]
  %s7 = sld [smem:[#allocation0]]
  $region46: #{tpu_custom_call.1} parent=0
    _
  %s9 = ssub.s32 1, %s7
  %s10 = scalar_select 0, %s9, %s7
  $region1: #{tpu_custom_call.1} parent=0
    #allocation2 [shape = 'u8[4096]{0}', space=vmem, size = 0x1000, scoped, tag = 'input window, operand 0, single buffered']
    #allocation3 [shape = 's32[1]{0}', space=sflag, size = 0x4, scoped, tag = 'scoped memory for tpu_custom_call.1']
    #allocation4 [shape = 's32[1]{0}', space=sflag, size = 0x4, scoped, tag = 'scoped memory for tpu_custom_call.1']
    #allocation5 [shape = 'u8[16384]{0}', space=vmem, size = 0x4000, scoped, tag = 'input window, operand 1, single buffered']
    #allocation6 [shape = 's32[1]{0}', space=sflag, size = 0x4, scoped, tag = 'scoped memory for tpu_custom_call.1']
    #allocation7 [shape = 'u8[32768]{0}', space=vmem, size = 0x8000, scoped, tag = 'input window, operand 3, single buffered']
    #allocation8 [shape = 'u8[4096]{0}', space=vmem, size = 0x1000, scoped, tag = 'output window, operand 0, single buffered']
    %11 = vsyncpa [#allocation3], 0
    %12 = vsyncpa [#allocation6], 0
    %13 = vsyncpa [#allocation4], 0
    // Predicated region
    $region2: #{tpu_custom_call.1} parent=1 // pred_check
      _
    $region3: #{tpu_custom_call.1} parent=1 // pred_check_branch
      %15 = sbr.rel (0) target = $region5
    $region4: #{tpu_custom_call.1} parent=1 // pred_region
      %s17 = ssub.s32 128, 128
      %18 = vsyncadd [#allocation3], %s17
      %s20 = sshll.u32 [#allocation2], 4
      %s21 = int_to_ptr.vmem [resolvable:$true] %s20
      %23 = dma.hbm_to_vmem [thread:$0]  %s0, 128, %s21, [#allocation3]
    $region5: #{tpu_custom_call.1} parent=1 // pred_fallthru
      _
    // Predicated region
    $region6: #{tpu_custom_call.1} parent=1 // pred_check
      _
    $region7: #{tpu_custom_call.1} parent=1 // pred_check_branch
      %25 = sbr.rel (0) target = $region9
    $region8: #{tpu_custom_call.1} parent=1 // pred_region
      %s27 = ssub.s32 512, 512
      %28 = vsyncadd [#allocation6], %s27
      %s29 = sshll.u32 [#allocation5], 4
      %s30 = int_to_ptr.vmem [resolvable:$true] %s29
      %35 = dma.hbm_to_vmem [thread:$0]  %s1, 512, %s30, [#allocation6], 128, 128, 8
    $region9: #{tpu_custom_call.1} parent=1 // pred_fallthru
      _
    // Predicated region
    $region10: #{tpu_custom_call.1} parent=1 // pred_check
      _
    $region11: #{tpu_custom_call.1} parent=1 // pred_check_branch
      %37 = sbr.rel (0) target = $region13
    $region12: #{tpu_custom_call.1} parent=1 // pred_region
      _
    $region13: #{tpu_custom_call.1} parent=1 // pred_fallthru
      _
    // Predicated region
    $region14: #{tpu_custom_call.1} parent=1 // pred_check
      _
    $region15: #{tpu_custom_call.1} parent=1 // pred_check_branch
      %39 = sbr.rel (0) target = $region17
    $region16: #{tpu_custom_call.1} parent=1 // pred_region
      %s41 = ssub.s32 1024, 1024
      %42 = vsyncadd [#allocation6], %s41
      %s43 = sshll.u32 [#allocation7], 4
      %s44 = int_to_ptr.vmem [resolvable:$true] %s43
      %49 = dma.hbm_to_vmem [thread:$0]  %s3, 1024, %s44, [#allocation6], 128, 128, 8
    $region17: #{tpu_custom_call.1} parent=1 // pred_fallthru
      _
    // Predicated region
    $region18: #{tpu_custom_call.1} parent=1 // pred_check
      _
    $region19: #{tpu_custom_call.1} parent=1 // pred_check_branch
      %51 = sbr.rel (0) target = $region21
    $region20: #{tpu_custom_call.1} parent=1 // pred_region
      _
    $region21: #{tpu_custom_call.1} parent=1 // pred_fallthru
      _
    // Predicated region
    $region22: #{tpu_custom_call.1} parent=1 // pred_check
      _
    $region23: #{tpu_custom_call.1} parent=1 // pred_check_branch
      %53 = sbr.rel (0) target = $region25
    $region24: #{tpu_custom_call.1} parent=1 // pred_region
      _
    $region25: #{tpu_custom_call.1} parent=1 // pred_fallthru
      _
    // Predicated region
    $region26: #{tpu_custom_call.1} parent=1 // pred_check
      _
    $region27: #{tpu_custom_call.1} parent=1 // pred_check_branch
      %55 = sbr.rel (0) target = $region29
    $region28: #{tpu_custom_call.1} parent=1 // pred_region
      %56 = dma.done [#allocation3], 128
    $region29: #{tpu_custom_call.1} parent=1 // pred_fallthru
      _
    // Predicated region
    $region30: #{tpu_custom_call.1} parent=1 // pred_check
      _
    $region31: #{tpu_custom_call.1} parent=1 // pred_check_branch
      %58 = sbr.rel (0) target = $region33
    $region32: #{tpu_custom_call.1} parent=1 // pred_region
      %59 = dma.done [#allocation6], 512
    $region33: #{tpu_custom_call.1} parent=1 // pred_fallthru
      _
    // Predicated region
    $region34: #{tpu_custom_call.1} parent=1 // pred_check
      _
    $region35: #{tpu_custom_call.1} parent=1 // pred_check_branch
      %61 = sbr.rel (0) target = $region37
    $region36: #{tpu_custom_call.1} parent=1 // pred_region
      %62 = dma.done [#allocation6], 1024
    $region37: #{tpu_custom_call.1} parent=1 // pred_fallthru
      _
    %v63 = vld [vmem:[#allocation2] sm:$0xff]
    %v64 = vld [vmem:[#allocation5] sm:$0xff]
    %v65 = vld [vmem:[#allocation5 + $0x8] sm:$0xff]
    %v66 = vld [vmem:[#allocation5 + $0x10] sm:$0xff]
    %v67 = vld [vmem:[#allocation5 + $0x18] sm:$0xff]
    %v68 = vld [vmem:[%s2] sm:$0x1]
    %v70 = vlaneseq
    %v71 = vshrl.u32 %v70, 7
    %v72 = vsub.s32 0, %v71
    %v73 = vrot.slane %v68, %v72
    %vm75 = vcmask 261120
    %v77 = vsel %vm75, %v63, 0
    %79 = vmatprep.subr.mxu0 0.0
    %80 = vmatpush1.msra.mxu0 %v64
    %81 = vmatprep.subr.mxu0 0.0
    %82 = vmatpush1.msra.mxu0 %v65
    %83 = vmatprep.subr.mxu0 0.0
    %84 = vmatpush1.msra.mxu0 %v66
    %85 = vmatprep.subr.mxu0 0.0
    %86 = vmatpush1.msra.mxu0 %v67
    %87 = vmatprep.subr.mxu0 0.0
    %88 = vmatpush1.msra.mxu0 0.0
    %89 = vmatprep.subr.mxu0 0.0
    %90 = vmatpush1.msra.mxu0 0.0
    %91 = vmatprep.subr.mxu0 0.0
    %92 = vmatpush1.msra.mxu0 0.0
    %93 = vmatprep.subr.mxu0 0.0
    %94 = vmatpush1.msra.mxu0 0.0
    %95 = vmatprep.subr.mxu0 0.0
    %96 = vmatpush1.msra.mxu0 0.0
    %97 = vmatprep.subr.mxu0 0.0
    %98 = vmatpush1.msra.mxu0 0.0
    %99 = vmatprep.subr.mxu0 0.0
    %100 = vmatpush1.msra.mxu0 0.0
    %101 = vmatprep.subr.mxu0 0.0
    %102 = vmatpush1.msra.mxu0 0.0
    %103 = vmatprep.subr.mxu0 0.0
    %104 = vmatpush1.msra.mxu0 0.0
    %105 = vmatprep.subr.mxu0 0.0
    %106 = vmatpush1.msra.mxu0 0.0
    %107 = vmatprep.subr.mxu0 0.0
    %108 = vmatpush1.msra.mxu0 0.0
    %109 = vmatprep.subr.mxu0 0.0
    %110 = vmatpush1.msra.mxu0 0.0
    %111 = vmatprep.subr.mxu0 0.0
    %112 = vmatpush1.msra.mxu0 0.0
    %113 = vmatprep.subr.mxu0 0.0
    %114 = vmatpush1.msra.mxu0 0.0
    %115 = vmatprep.subr.mxu0 0.0
    %116 = vmatpush1.msra.mxu0 0.0
    %117 = vmatprep.subr.mxu0 0.0
    %118 = vmatpush1.msra.mxu0 0.0
    %119 = vmatprep.subr.mxu0 0.0
    %120 = vmatpush1.msra.mxu0 0.0
    %121 = vmatprep.subr.mxu0 0.0
    %122 = vmatpush1.msra.mxu0 0.0
    %123 = vmatprep.subr.mxu0 0.0
    %124 = vmatpush1.msra.mxu0 0.0
    %125 = vmatprep.subr.mxu0 0.0
    %126 = vmatpush1.msra.mxu0 0.0
    %127 = vmatprep.subr.mxu0 0.0
    %128 = vmatpush1.msra.mxu0 0.0
    %129 = vmatprep.subr.mxu0 0.0
    %130 = vmatpush1.msra.mxu0 0.0
    %131 = vmatprep.subr.mxu0 0.0
    %132 = vmatpush1.msra.mxu0 0.0
    %133 = vmatprep.subr.mxu0 0.0
    %134 = vmatpush1.msra.mxu0 0.0
    %135 = vmatprep.subr.mxu0 0.0
    %136 = vmatpush1.msra.mxu0 0.0
    %137 = vmatprep.subr.mxu0 0.0
    %138 = vmatpush1.msra.mxu0 0.0
    %139 = vmatprep.subr.mxu0 0.0
    %140 = vmatpush1.msra.mxu0 0.0
    %141 = vmatprep.subr.mxu0 0.0
    %142 = vmatpush1.msra.mxu0 0.0
    %143 = vmatprep.mubr.f32.mxu0 0.0
    %144 = vmatmul.mubr.f32.gmra.mrb[0].mxu0 %v77
    %v145 = vpop.f32.mrb[0].mxu0
    %v146 = vadd.f32 %v73, %v145
    %v147 = vpop.f32.mrb[0].mxu0
    %148 = vdwg.mxu0
    %v149 = vmax.f32 %v146, 0.0
    %v150 = vld [vmem:[#allocation7] sm:$0xff]
    %v151 = vld [vmem:[#allocation7 + $0x8] sm:$0xff]
    %v152 = vld [vmem:[#allocation7 + $0x10] sm:$0xff]
    %v153 = vld [vmem:[#allocation7 + $0x18] sm:$0xff]
    %v154 = vld [vmem:[#allocation7 + $0x20] sm:$0xff]
    %v155 = vld [vmem:[#allocation7 + $0x28] sm:$0xff]
    %v156 = vld [vmem:[#allocation7 + $0x30] sm:$0xff]
    %v157 = vld [vmem:[#allocation7 + $0x38] sm:$0xff]
    %v158 = vld [vmem:[%s4] sm:$0x1]
    %v160 = vlaneseq
    %v161 = vshrl.u32 %v160, 7
    %v162 = vsub.s32 0, %v161
    %v163 = vrot.slane %v158, %v162
    %vm165 = vcmask 523264
    %v167 = vsel %vm165, %v149, 0
    %169 = vmatprep.subr.mxu0 0.0
    %170 = vmatpush1.msra.mxu0 %v150
    %171 = vmatprep.subr.mxu0 0.0
    %172 = vmatpush1.msra.mxu0 %v151
    %173 = vmatprep.subr.mxu0 0.0
    %174 = vmatpush1.msra.mxu0 %v152
    %175 = vmatprep.subr.mxu0 0.0
    %176 = vmatpush1.msra.mxu0 %v153
    %177 = vmatprep.subr.mxu0 0.0
    %178 = vmatpush1.msra.mxu0 %v154
    %179 = vmatprep.subr.mxu0 0.0
    %180 = vmatpush1.msra.mxu0 %v155
    %181 = vmatprep.subr.mxu0 0.0
    %182 = vmatpush1.msra.mxu0 %v156
    %183 = vmatprep.subr.mxu0 0.0
    %184 = vmatpush1.msra.mxu0 %v157
    %185 = vmatprep.subr.mxu0 0.0
    %186 = vmatpush1.msra.mxu0 0.0
    %187 = vmatprep.subr.mxu0 0.0
    %188 = vmatpush1.msra.mxu0 0.0
    %189 = vmatprep.subr.mxu0 0.0
    %190 = vmatpush1.msra.mxu0 0.0
    %191 = vmatprep.subr.mxu0 0.0
    %192 = vmatpush1.msra.mxu0 0.0
    %193 = vmatprep.subr.mxu0 0.0
    %194 = vmatpush1.msra.mxu0 0.0
    %195 = vmatprep.subr.mxu0 0.0
    %196 = vmatpush1.msra.mxu0 0.0
    %197 = vmatprep.subr.mxu0 0.0
    %198 = vmatpush1.msra.mxu0 0.0
    %199 = vmatprep.subr.mxu0 0.0
    %200 = vmatpush1.msra.mxu0 0.0
    %201 = vmatprep.subr.mxu0 0.0
    %202 = vmatpush1.msra.mxu0 0.0
    %203 = vmatprep.subr.mxu0 0.0
    %204 = vmatpush1.msra.mxu0 0.0
    %205 = vmatprep.subr.mxu0 0.0
    %206 = vmatpush1.msra.mxu0 0.0
    %207 = vmatprep.subr.mxu0 0.0
    %208 = vmatpush1.msra.mxu0 0.0
    %209 = vmatprep.subr.mxu0 0.0
    %210 = vmatpush1.msra.mxu0 0.0
    %211 = vmatprep.subr.mxu0 0.0
    %212 = vmatpush1.msra.mxu0 0.0
    %213 = vmatprep.subr.mxu0 0.0
    %214 = vmatpush1.msra.mxu0 0.0
    %215 = vmatprep.subr.mxu0 0.0
    %216 = vmatpush1.msra.mxu0 0.0
    %217 = vmatprep.subr.mxu0 0.0
    %218 = vmatpush1.msra.mxu0 0.0
    %219 = vmatprep.subr.mxu0 0.0
    %220 = vmatpush1.msra.mxu0 0.0
    %221 = vmatprep.subr.mxu0 0.0
    %222 = vmatpush1.msra.mxu0 0.0
    %223 = vmatprep.subr.mxu0 0.0
    %224 = vmatpush1.msra.mxu0 0.0
    %225 = vmatprep.subr.mxu0 0.0
    %226 = vmatpush1.msra.mxu0 0.0
    %227 = vmatprep.subr.mxu0 0.0
    %228 = vmatpush1.msra.mxu0 0.0
    %229 = vmatprep.subr.mxu0 0.0
    %230 = vmatpush1.msra.mxu0 0.0
    %231 = vmatprep.subr.mxu0 0.0
    %232 = vmatpush1.msra.mxu0 0.0
    %233 = vmatprep.mubr.f32.mxu0 0.0
    %234 = vmatmul.mubr.f32.gmra.mrb[0].mxu0 %v167
    %v235 = vpop.f32.mrb[0].mxu0
    %v236 = vadd.f32 %v163, %v235
    %v237 = vpop.f32.mrb[0].mxu0
    %238 = vdwg.mxu0
    %v239 = vmul.f32 %v236, 1.442695
    %v240 = vpow.pop %v239
    %v241 = vld [vmem:[%s5] sm:$0xff]
    %243 = vrot.lane.b32.xlu0 %v241, 32
    %v244 = vpop.permute.xlu0 %243
    %v246 = vmul.f32 %v240, %v244
    %248 = vrot.lane.b32.xlu0 %v246, 96
    %v249 = vpop.permute.xlu0 %248
    %v251 = vadd.f32 %v236, %v249
    %v252 = vadd.f32 %v236, 1.0
    %v253 = vmul.f32 %v236, %v236
    %255 = vrot.lane.b32.xlu0 %v253, 32
    %v256 = vpop.permute.xlu0 %255
    %v258 = vsub.f32 %v252, %v256
    %v259 = vmul.f32 %v240, %v240
    %v260 = vsub.f32 %v258, %v259
    %v261 = vmul.f32 %v260, 0.5
    %262 = vst.msk [vmem:[#allocation8] sm:$0xff] %vm75, %v251
    %vm263 = vcmask 523520
    %264 = vst.msk [vmem:[#allocation8] sm:$0xff] %vm263, %v261
    // Predicated region
    $region38: #{tpu_custom_call.1} parent=1 // pred_check
      _
    $region39: #{tpu_custom_call.1} parent=1 // pred_check_branch
      %266 = sbr.rel (0) target = $region41
    $region40: #{tpu_custom_call.1} parent=1 // pred_region
      %s268 = ssub.s32 128, 128
      %269 = vsyncadd [#allocation4], %s268
      %s271 = sshll.u32 [#allocation8], 4
      %s272 = int_to_ptr.vmem [resolvable:$true] %s271
      %274 = dma.vmem_to_hbm [thread:$0]  %s272, 128, %s6, [#allocation4]
    $region41: #{tpu_custom_call.1} parent=1 // pred_fallthru
      _
    // Predicated region
    $region42: #{tpu_custom_call.1} parent=1 // pred_check
      _
    $region43: #{tpu_custom_call.1} parent=1 // pred_check_branch
      %276 = sbr.rel (0) target = $region45
    $region44: #{tpu_custom_call.1} parent=1 // pred_region
      %277 = dma.done [#allocation4], 128
    $region45: #{tpu_custom_call.1} parent=1 // pred_fallthru
      _
    %278 = vsyncpa [#allocation3], 1
    %279 = vsyncpa [#allocation6], 1
    %280 = vsyncpa [#allocation4], 1

</llo_original>
